<compile_context>
chip_gen: v5e
topology: v5e:2x2
jax: 0.10.0
libtpu: 0.0.40
codegen_flags: <defaults>
</compile_context>

<pallas_src>
import math

import jax
import jax.numpy as jnp
from jax.experimental import pallas as pl
from jax.experimental.pallas import tpu as pltpu


def _layerscale_kernel(x_ref, gamma_ref, o_ref):
    # x_ref: (TM, D_eff) block of the (possibly lane-folded) input
    # gamma_ref: (1, D_eff) block, identical for every grid step
    x = x_ref[...].astype(jnp.float32)
    g = gamma_ref[...].astype(jnp.float32)      # (1, D_eff) broadcasts over rows
    o_ref[...] = (x * g).astype(o_ref.dtype)


def _round_up(n, m):
    return ((n + m - 1) // m) * m


def _tpu_cores_and_vmem():
    """Best-effort (tensorcores-per-chip, VMEM bytes). Conservative fallbacks."""
    vmem = 64 * 1024 * 1024   # v7x has the smallest per-TC VMEM
    cores = 2                 # assume 2 TCs so v7x always gets a balanced split
    try:
        info = pltpu.get_tpu_info()
        v = getattr(info, "vmem_capacity_bytes", None)
        if isinstance(v, int) and v > 0:
            vmem = v
        for name in ("num_cores", "num_tensorcores", "tensorcores_per_chip",
                     "core_count"):
            c = getattr(info, name, None)
            if isinstance(c, int) and c > 0:
                cores = c
                break
    except Exception:
        pass
    return cores, vmem


def layer_scale(x, gamma, *, out_dtype=jnp.float32, alias_input=False):
    """x: (..., D); gamma: (D,). Returns `out_dtype` array (default float32)."""
    orig_shape = x.shape
    D = orig_shape[-1]
    assert gamma.shape == (D,), f"gamma shape {gamma.shape} != ({D},)"
    out_dtype = jnp.dtype(out_dtype)

    x2 = x.reshape(-1, D)
    rows = x2.shape[0]
    gamma2 = gamma

    # --- lane-dense fold: make the last (lane) dim a multiple of 128 ---------
    # f = 128 // gcd(D, 128) is the smallest factor with (f*D) % 128 == 0.
    d_eff, rows_eff = D, rows
    if D % 128 != 0:
        f = 128 // math.gcd(D, 128)
        if f > 1 and rows >= f and rows % f == 0:
            rows_eff = rows // f
            d_eff = f * D
            x2 = x2.reshape(rows_eff, d_eff)     # contiguous reshape (free)
            gamma2 = jnp.tile(gamma, (f,))       # per-segment gamma
        # else: fall back to masked partial stores (correct, slower).
        # TODO(synk): optionally pad rows to a multiple of f to avoid this cliff.
    gamma2 = gamma2.reshape(1, d_eff)

    num_cores, vmem_cap = _tpu_cores_and_vmem()

    in_bytes = x2.dtype.itemsize
    out_bytes = out_dtype.itemsize

    # --- row tile: ~8 MiB output blocks, capped by a VMEM budget -------------
    budget = int(vmem_cap * 0.6)                       # double-buffered pipeline budget
    per_row = 2 * d_eff * (in_bytes + out_bytes)       # 2 bufs x (in + out) per row
    target_out_block = 8 * 1024 * 1024                 # bytes per output block
    tm_target = max(8, target_out_block // (out_bytes * d_eff))
    tm_budget = max(8, budget // per_row)
    tm = min(tm_target, tm_budget)
    tm = max(8, (tm // 8) * 8)

    if rows_eff < 8:
        tm = rows_eff                                  # full-extent block (allowed)
    else:
        tm = min(tm, max(8, (rows_eff // 8) * 8))      # never exceed the array
        # Balance grid steps across TensorCores (v7x megacore). On 1-TC chips
        # (v5e/v6e) a single resident block handles the whole tensor.
        if num_cores >= 2 and rows_eff > 8:
            steps = pl.cdiv(rows_eff, tm)
            steps = _round_up(max(steps, num_cores), num_cores)
            tm_bal = _round_up(pl.cdiv(rows_eff, steps), 8)
            tm = max(8, min(tm, tm_bal))

    grid = (pl.cdiv(rows_eff, tm),)

    # vmem_limit derived from the actual pipelined footprint (+ headroom).
    pipeline_bytes = (2 * tm * d_eff * (in_bytes + out_bytes)
                      + 2 * d_eff * gamma2.dtype.itemsize)
    vmem_limit = int(min(vmem_cap, max(32 * 1024 * 1024,
                                       pipeline_bytes + (4 << 20))))

    io_aliases = {}
    if alias_input and x2.dtype == out_dtype:
        io_aliases = {0: 0}   # PyTorch inplace=True analogue (needs donated buffer)

    out = pl.pallas_call(
        _layerscale_kernel,
        out_shape=jax.ShapeDtypeStruct((rows_eff, d_eff), out_dtype),
        grid_spec=pltpu.PrefetchScalarGridSpec(
            num_scalar_prefetch=0,
            grid=grid,
            in_specs=[
                pl.BlockSpec((tm, d_eff), lambda i: (i, 0)),
                pl.BlockSpec((1, d_eff), lambda i: (0, 0)),
            ],
            out_specs=pl.BlockSpec((tm, d_eff), lambda i: (i, 0)),
        ),
        input_output_aliases=io_aliases,
        compiler_params=pltpu.CompilerParams(
            dimension_semantics=("parallel",),
            vmem_limit_bytes=vmem_limit,
        ),
    )(x2, gamma2)

    return out.reshape(orig_shape)


if __name__ == "__main__":
    key = jax.random.PRNGKey(0)
    init_values = 1e-05
    k1, k2, k3 = jax.random.split(key, 3)

    # --- case 1: small D (lane-dense fold, D=32 -> f=4, d_eff=128) ----------
    B, N, D = 2, 8, 32
    x = jax.random.normal(k1, (B, N, D), dtype=jnp.float32)
    gamma = init_values * jnp.ones((D,), dtype=jnp.float32)
    out = jax.block_until_ready(layer_scale(x, gamma))
    ref = x.astype(jnp.float32) * gamma.astype(jnp.float32)
    assert out.shape == x.shape and out.dtype == jnp.float32
    assert jnp.allclose(out, ref, atol=1e-6, rtol=1e-6)

    # --- case 2: D multiple of 128, bf16 input, multi-step balanced grid ----
    B2, N2, D2 = 2, 8, 256
    x2 = jax.random.normal(k2, (B2, N2, D2), dtype=jnp.bfloat16)
    gamma2 = init_values * jnp.ones((D2,), dtype=jnp.float32)
    out2 = jax.block_until_ready(layer_scale(x2, gamma2))
    ref2 = x2.astype(jnp.float32) * gamma2.astype(jnp.float32)
    assert out2.shape == x2.shape and out2.dtype == jnp.float32
    assert jnp.allclose(out2, ref2, atol=1e-6, rtol=1e-6)

    # --- case 3: gcd-based fold (D=96 -> f=4, d_eff=384) --------------------
    B3, N3, D3 = 2, 8, 96
    x3 = jax.random.normal(k3, (B3, N3, D3), dtype=jnp.float32)
    gamma3 = init_values * jnp.ones((D3,), dtype=jnp.float32)
    out3 = jax.block_until_ready(layer_scale(x3, gamma3))
    ref3 = x3.astype(jnp.float32) * gamma3.astype(jnp.float32)
    assert out3.shape == x3.shape and out3.dtype == jnp.float32
    assert jnp.allclose(out3, ref3, atol=1e-6, rtol=1e-6)

    print("KERNEL_OK")
</pallas_src>

<mosaic_0001>
module attributes {stable_mosaic.version = 11 : i64} {
  func.func @_layerscale_kernel(%arg0: i32, %arg1: memref<4x128xf32, #tpu.memory_space<vmem>>, %arg2: memref<1x128xf32, #tpu.memory_space<vmem>>, %arg3: memref<4x128xf32, #tpu.memory_space<vmem>>) attributes {dimension_semantics = [#tpu.dimension_semantics<parallel>], iteration_bounds = array<i64: 1>, scalar_prefetch = 0 : i64, scratch_operands = 0 : i64, tpu.core_type = #tpu.core_type<tc>, window_params = [{transform_indices = @transform_0, window_bounds = array<i64: 4, 128>}, {pipeline_mode = #tpu.pipeline_mode<synchronous>, transform_indices = @transform_1, window_bounds = array<i64: 1, 128>}, {transform_indices = @transform_2, window_bounds = array<i64: 4, 128>}]} {
    %c0 = arith.constant 0 : index
    %c0_0 = arith.constant 0 : index
    %0 = vector.load %arg1[%c0, %c0_0] : memref<4x128xf32, #tpu.memory_space<vmem>>, vector<4x128xf32>
    %c0_1 = arith.constant 0 : index
    %c0_2 = arith.constant 0 : index
    %1 = vector.load %arg2[%c0_1, %c0_2] : memref<1x128xf32, #tpu.memory_space<vmem>>, vector<1x128xf32>
    %2 = vector.broadcast %1 : vector<1x128xf32> to vector<4x128xf32>
    %3 = arith.mulf %0, %2 : vector<4x128xf32>
    %c0_3 = arith.constant 0 : index
    %c0_4 = arith.constant 0 : index
    %4 = vector.load %arg3[%c0_3, %c0_4] : memref<4x128xf32, #tpu.memory_space<vmem>>, vector<4x128xf32>
    tpu.vector_store %arg3[%c0_3, %c0_4], %3 {strides = array<i32>} : memref<4x128xf32, #tpu.memory_space<vmem>>, vector<4x128xf32>,
    return
  }
  func.func @transform_0(%arg0: i32) -> (i32, i32) {
    %c0_i32 = arith.constant 0 : i32
    %c0_i32_0 = arith.constant 0 : i32
    return %arg0, %c0_i32 : i32, i32
  }
  func.func @transform_1(%arg0: i32) -> (i32, i32) {
    %c0_i32 = arith.constant 0 : i32
    %c0_i32_0 = arith.constant 0 : i32
    %c0_i32_1 = arith.constant 0 : i32
    return %c0_i32, %c0_i32_0 : i32, i32
  }
  func.func @transform_2(%arg0: i32) -> (i32, i32) {
    %c0_i32 = arith.constant 0 : i32
    %c0_i32_0 = arith.constant 0 : i32
    return %arg0, %c0_i32 : i32, i32
  }
}

</mosaic_0001>

<llo_original>
// kernel: tpu_custom_call.1
$region0: #{tpu_custom_call.1}
  #allocation0 [shape = 'u32[]', space=smem, size = 0x4, offset = 0x4, fixed_abs, tag = 'smem constant byte address 0x4 - core index']
  #allocation1 [shape = 'u32[72,128]{1,0:T(1,128)}', space=vmem, size = 0x9000, scoped, tag = 'internal scratch']
  %s0 = inlined_call_operand.hbm [shape: f32[4,128], index: 0, kind: input, shape index: {}]
  %s1 = inlined_call_operand.hbm [shape: f32[1,128], index: 1, kind: input, shape index: {}]
  %s2 = inlined_call_operand.hbm [shape: f32[4,128], index: 2, kind: output, shape index: {}]
  %s3 = sld [smem:[#allocation0]]
  $region26: #{tpu_custom_call.1} parent=0
    _
  %s5 = ssub.s32 1, %s3
  %s6 = scalar_select 0, %s5, %s3
  $region1: #{tpu_custom_call.1} parent=0
    #allocation2 [shape = 'u8[2048]{0}', space=vmem, size = 0x800, scoped, tag = 'input window, operand 0, single buffered']
    #allocation3 [shape = 's32[1]{0}', space=sflag, size = 0x4, scoped, tag = 'scoped memory for tpu_custom_call.1']
    #allocation4 [shape = 's32[1]{0}', space=sflag, size = 0x4, scoped, tag = 'scoped memory for tpu_custom_call.1']
    #allocation5 [shape = 'u8[512]{0}', space=vmem, size = 0x400, scoped, tag = 'input window, operand 1, single buffered']
    #allocation6 [shape = 's32[1]{0}', space=sflag, size = 0x4, scoped, tag = 'scoped memory for tpu_custom_call.1']
    #allocation7 [shape = 'u8[2048]{0}', space=vmem, size = 0x800, scoped, tag = 'output window, operand 0, single buffered']
    %7 = vsyncpa [#allocation3], 0
    %8 = vsyncpa [#allocation6], 0
    %9 = vsyncpa [#allocation4], 0
    // Predicated region
    $region2: #{tpu_custom_call.1} parent=1 // pred_check
      _
    $region3: #{tpu_custom_call.1} parent=1 // pred_check_branch
      %11 = sbr.rel (0) target = $region5
    $region4: #{tpu_custom_call.1} parent=1 // pred_region
      %13 = vsyncadd [#allocation3], 0
      %s15 = sshll.u32 %s0, 4
      %s16 = int_to_ptr.hbm [resolvable:$true] %s15
      %s17 = sshll.u32 [#allocation2], 4
      %s18 = int_to_ptr.vmem [resolvable:$true] %s17
      %20 = dma.hbm_to_vmem [thread:$0]  %s16, 64, %s18, [#allocation3]
    $region5: #{tpu_custom_call.1} parent=1 // pred_fallthru
      _
    // Predicated region
    $region6: #{tpu_custom_call.1} parent=1 // pred_check
      _
    $region7: #{tpu_custom_call.1} parent=1 // pred_check_branch
      %22 = sbr.rel (0) target = $region9
    $region8: #{tpu_custom_call.1} parent=1 // pred_region
      %24 = vsyncadd [#allocation6], 0
      %s26 = sshll.u32 %s1, 4
      %s27 = int_to_ptr.hbm [resolvable:$true] %s26
      %s28 = sshll.u32 [#allocation5], 4
      %s29 = int_to_ptr.vmem [resolvable:$true] %s28
      %31 = dma.hbm_to_vmem [thread:$0]  %s27, 16, %s29, [#allocation6]
    $region9: #{tpu_custom_call.1} parent=1 // pred_fallthru
      _
    // Predicated region
    $region10: #{tpu_custom_call.1} parent=1 // pred_check
      _
    $region11: #{tpu_custom_call.1} parent=1 // pred_check_branch
      %33 = sbr.rel (0) target = $region13
    $region12: #{tpu_custom_call.1} parent=1 // pred_region
      %35 = dma.done [#allocation3], 64
    $region13: #{tpu_custom_call.1} parent=1 // pred_fallthru
      _
    // Predicated region
    $region14: #{tpu_custom_call.1} parent=1 // pred_check
      _
    $region15: #{tpu_custom_call.1} parent=1 // pred_check_branch
      %37 = sbr.rel (0) target = $region17
    $region16: #{tpu_custom_call.1} parent=1 // pred_region
      %39 = dma.done [#allocation6], 16
    $region17: #{tpu_custom_call.1} parent=1 // pred_fallthru
      _
    %v40 = vld [vmem:[#allocation2] sm:$0xf]
    %v41 = vld [vmem:[#allocation5] sm:$0x1]
    %v43 = vperm.slane %v41, 0
    %v45 = vmul.f32 %v40, %v43
    %46 = vst [vmem:[#allocation7] sm:$0xf] %v45
    // Predicated region
    $region18: #{tpu_custom_call.1} parent=1 // pred_check
      _
    $region19: #{tpu_custom_call.1} parent=1 // pred_check_branch
      %48 = sbr.rel (0) target = $region21
    $region20: #{tpu_custom_call.1} parent=1 // pred_region
      %50 = vsyncadd [#allocation4], 0
      %s52 = sshll.u32 [#allocation7], 4
      %s53 = int_to_ptr.vmem [resolvable:$true] %s52
      %s54 = sshll.u32 %s2, 4
      %s55 = int_to_ptr.hbm [resolvable:$true] %s54
      %57 = dma.vmem_to_hbm [thread:$0]  %s53, 64, %s55, [#allocation4]
    $region21: #{tpu_custom_call.1} parent=1 // pred_fallthru
      _
    // Predicated region
    $region22: #{tpu_custom_call.1} parent=1 // pred_check
      _
    $region23: #{tpu_custom_call.1} parent=1 // pred_check_branch
      %59 = sbr.rel (0) target = $region25
    $region24: #{tpu_custom_call.1} parent=1 // pred_region
      %61 = dma.done [#allocation4], 64
    $region25: #{tpu_custom_call.1} parent=1 // pred_fallthru
      _
    %62 = vsyncpa [#allocation3], 1
    %63 = vsyncpa [#allocation6], 1
    %64 = vsyncpa [#allocation4], 1

</llo_original>
